<compile_context>
chip_gen: v7x
topology: tpu7x:2x2x1
jax: 0.10.0
libtpu: 0.0.40
codegen_flags: <defaults>
</compile_context>

<pallas_src>
import functools
import math

import jax
import jax.numpy as jnp
import numpy as np
from jax import lax
from jax.experimental import pallas as pl
from jax.experimental.pallas import tpu as pltpu

_LANE = 128                 # TPU lane width; time tiles are multiples of this.
_MAX_COLS_PER_STEP = 32768  # upper bound on Bb * TT columns handled per grid step
_MAX_BATCH_BLOCK = 16       # cap on batch rows per grid step (keeps kernel unroll small)


# ---------------------------------------------------------------------------
# Parameter setup: slaney mel filterbank (deterministic, matches torchaudio)
# ---------------------------------------------------------------------------
def _hz_to_mel_slaney(freq):
    freq = np.asarray(freq, dtype=np.float64)
    f_sp = 200.0 / 3.0
    min_log_hz = 1000.0
    min_log_mel = min_log_hz / f_sp
    logstep = math.log(6.4) / 27.0
    mels = freq / f_sp
    return np.where(
        freq >= min_log_hz,
        min_log_mel + np.log(np.maximum(freq, min_log_hz) / min_log_hz) / logstep,
        mels,
    )


def _mel_to_hz_slaney(mels):
    mels = np.asarray(mels, dtype=np.float64)
    f_sp = 200.0 / 3.0
    min_log_hz = 1000.0
    min_log_mel = min_log_hz / f_sp
    logstep = math.log(6.4) / 27.0
    freqs = f_sp * mels
    return np.where(
        mels >= min_log_mel,
        min_log_hz * np.exp(logstep * (mels - min_log_mel)),
        freqs,
    )


def melscale_fbanks_slaney(n_freqs: int, n_mels: int, sample_rate: int,
                           f_min: float, f_max: float) -> np.ndarray:
    """Returns filterbank of shape (n_freqs, n_mels), slaney-normalized."""
    all_freqs = np.linspace(0.0, sample_rate // 2, n_freqs)
    m_min = _hz_to_mel_slaney(f_min)
    m_max = _hz_to_mel_slaney(f_max)
    m_pts = np.linspace(m_min, m_max, n_mels + 2)
    f_pts = _mel_to_hz_slaney(m_pts)                       # (n_mels + 2,)

    f_diff = f_pts[1:] - f_pts[:-1]                        # (n_mels + 1,)
    slopes = f_pts[None, :] - all_freqs[:, None]           # (n_freqs, n_mels + 2)
    down_slopes = -slopes[:, :-2] / f_diff[:-1]            # (n_freqs, n_mels)
    up_slopes = slopes[:, 2:] / f_diff[1:]                 # (n_freqs, n_mels)
    fb = np.maximum(0.0, np.minimum(down_slopes, up_slopes))

    # norm == 'slaney'
    enorm = 2.0 / (f_pts[2:n_mels + 2] - f_pts[:n_mels])
    fb = fb * enorm[None, :]
    return fb.astype(np.float32)


# ---------------------------------------------------------------------------
# Pallas kernel: out[b, :, t0:t0+TT] = log(fb @ x[b, :, t0:t0+TT] + 2^-24)
# ---------------------------------------------------------------------------
def _melscale_kernel(fb_ref, x_ref, o_ref, *, log_scale: bool, bb: int):
    fb = fb_ref[...]                  # (nfilt, n_freqs), resident across the grid
    for i in range(bb):               # small static unroll over batch rows in block
        y = jnp.dot(fb, x_ref[i],     # (nfilt, TT) on the MXU, f32 accumulate
                    preferred_element_type=jnp.float32,
                    precision=lax.Precision.HIGHEST)
        if log_scale:
            y = jnp.log(y + jnp.float32(2.0 ** -24))       # VPU add + EUP log
        o_ref[i] = y.astype(o_ref.dtype)


def _round_up(v: int, m: int) -> int:
    return ((v + m - 1) // m) * m


def _cdiv(a: int, b: int) -> int:
    return -(-a // b)


def mel_scale(fb: jax.Array, x: jax.Array, log_scale: bool = True,
              time_tile: int | None = None) -> jax.Array:
    """fb: (nfilt, n_freqs); x: (batch, n_freqs, time) -> (batch, nfilt, time)."""
    B, F, T = x.shape
    nfilt = fb.shape[0]
    # Match the PyTorch module: self.fb.to(x.dtype) before matmul
    # (matmul still accumulates in f32 via preferred_element_type).
    fb = fb.astype(x.dtype)
    itemsize = jnp.dtype(x.dtype).itemsize

    # ---- generation-aware VMEM budget (v7x: 64 MiB VMEM, v5e/v6e: 128 MiB) ----
    try:
        vmem_cap = int(pltpu.get_tpu_info().vmem_capacity_bytes)
    except Exception:
        vmem_cap = 64 * 1024 * 1024  # conservative fallback (safe on every gen)
    budget = min(48 * 1024 * 1024,
                 max(16 * 1024 * 1024, vmem_cap // 2 - 8 * 1024 * 1024))

    fb_bytes = nfilt * F * itemsize
    per_col = 2 * itemsize * (F + nfilt)   # double-buffered bytes per (row, column)
    T128 = _round_up(T, _LANE)

    # ---- choose (Bb, TT): fill the budget; prefer batch-blocking when T is short ----
    if time_tile is not None:
        TT = max(_LANE, (int(time_tile) // _LANE) * _LANE)
        Bb = 1
    else:
        max_cols = (budget - 2 * fb_bytes) // per_col
        max_cols = max(_LANE, min(_MAX_COLS_PER_STEP, (max_cols // _LANE) * _LANE))
        if max_cols >= T128:
            TT = T128
            Bb = max(1, min(B, _MAX_BATCH_BLOCK, max_cols // T128))
        else:
            TT = max_cols
            Bb = 1

        # Megacore: make sure the (fully parallel) grid has >= 2 steps when possible,
        # so both v7x TensorCores get work (harmless on single-TC chips).
        if _cdiv(B, Bb) * _cdiv(T, TT) < 2:
            if Bb > 1:
                Bb = _cdiv(Bb, 2)
            elif T > _LANE:
                TT = max(_LANE, _round_up(_cdiv(T, 2), _LANE))

    n_b = _cdiv(B, Bb)
    n_t = _cdiv(T, TT)

    # ---- VMEM limit: actual footprint + headroom, never close to physical cap ----
    footprint = 2 * fb_bytes + Bb * TT * per_col
    vmem_limit = min(vmem_cap * 3 // 4,
                     footprint + max(footprint // 2, 8 * 1024 * 1024))

    kernel = functools.partial(_melscale_kernel, log_scale=log_scale, bb=Bb)
    cost = pl.CostEstimate(
        flops=2 * B * nfilt * F * T,
        transcendentals=(B * nfilt * T) if log_scale else 0,
        bytes_accessed=itemsize * (B * F * T + B * nfilt * T + nfilt * F),
    )

    # No padding / no output slice: partial trailing blocks (in batch and time) are
    # handled natively by Pallas; OOB columns of the last block are discarded.
    out = pl.pallas_call(
        kernel,
        out_shape=jax.ShapeDtypeStruct((B, nfilt, T), x.dtype),
        grid=(n_b, n_t),
        in_specs=[
            # filterbank: full (nfilt, n_freqs) tile; constant block index so it
            # stays resident in VMEM (no re-DMA between grid steps).
            pl.BlockSpec((nfilt, F), lambda b, t: (0, 0)),
            # a (Bb batch rows, time-tile) slab of the spectrogram per grid step
            pl.BlockSpec((Bb, F, TT), lambda b, t: (b, 0, t)),
        ],
        out_specs=pl.BlockSpec((Bb, nfilt, TT), lambda b, t: (b, 0, t)),
        compiler_params=pltpu.CompilerParams(
            # both axes independent -> megacore sharding on v7x, harmless elsewhere
            dimension_semantics=("parallel", "parallel"),
            vmem_limit_bytes=int(vmem_limit),
        ),
        cost_estimate=cost,
    )(fb, x)
    return out


# ---------------------------------------------------------------------------
# Demo / self-check
# ---------------------------------------------------------------------------
if __name__ == "__main__":
    # Module hyperparameters (small, consistent with MelScale(__init__)).
    sample_rate = 16000
    n_fft = 64                       # -> n_freqs = 1 + n_fft // 2 = 33
    nfilt = 16
    log_scale = True
    n_freqs = 1 + n_fft // 2

    # Deterministic filterbank (buffer `fb`), kept in squeezed (nfilt, n_freqs) form.
    fb_np = melscale_fbanks_slaney(n_freqs, nfilt, sample_rate,
                                   f_min=0.0, f_max=sample_rate / 2).T  # (nfilt, n_freqs)
    fb = jnp.asarray(fb_np, dtype=jnp.float32)

    def reference(fb_, x_):
        r = jnp.einsum("mf,bft->bmt", fb_, x_, precision=lax.Precision.HIGHEST)
        if log_scale:
            r = jnp.log(r + 2.0 ** -24)
        return r

    key = jax.random.PRNGKey(0)

    # Test 1: small shapes, single partial time block (T < 128), batch-block path.
    batch, time = 2, 16
    x = jax.random.uniform(key, (batch, n_freqs, time), jnp.float32, 0.0, 1.0)
    out = jax.block_until_ready(mel_scale(fb, x, log_scale))
    ref = reference(fb, x)
    assert out.shape == (batch, nfilt, time)
    np.testing.assert_allclose(np.asarray(out), np.asarray(ref), rtol=1e-5, atol=1e-5)

    # Test 2: multi-tile grid + ragged (partial) last time block, no wrapper pad.
    time2 = 300
    x2 = jax.random.uniform(jax.random.PRNGKey(1), (batch, n_freqs, time2),
                            jnp.float32, 0.0, 1.0)
    out2 = jax.block_until_ready(mel_scale(fb, x2, log_scale, time_tile=128))
    ref2 = reference(fb, x2)
    assert out2.shape == (batch, nfilt, time2)
    np.testing.assert_allclose(np.asarray(out2), np.asarray(ref2), rtol=1e-5, atol=1e-5)

    # Test 3: auto-sized tiles + megacore split path (B=1 forces a time split).
    time3 = 1000
    x3 = jax.random.uniform(jax.random.PRNGKey(2), (1, n_freqs, time3),
                            jnp.float32, 0.0, 1.0)
    out3 = jax.block_until_ready(mel_scale(fb, x3, log_scale))
    ref3 = reference(fb, x3)
    assert out3.shape == (1, nfilt, time3)
    np.testing.assert_allclose(np.asarray(out3), np.asarray(ref3), rtol=1e-5, atol=1e-5)

    print("KERNEL_OK")
</pallas_src>

<mosaic_0001>
module attributes {stable_mosaic.version = 11 : i64} {
  func.func @_melscale_kernel(%arg0: i32, %arg1: i32, %arg2: memref<16x33xf32, #tpu.memory_space<vmem>>, %arg3: memref<1x33x128xf32, #tpu.memory_space<vmem>>, %arg4: memref<1x16x128xf32, #tpu.memory_space<vmem>>) attributes {dimension_semantics = [#tpu.dimension_semantics<parallel>, #tpu.dimension_semantics<parallel>], iteration_bounds = array<i64: 2, 1>, scalar_prefetch = 0 : i64, scratch_operands = 0 : i64, tpu.core_type = #tpu.core_type<tc>, window_params = [{pipeline_mode = #tpu.pipeline_mode<synchronous>, transform_indices = @transform_0, window_bounds = array<i64: 16, 33>}, {transform_indices = @transform_1, window_bounds = array<i64: 1, 33, 128>}, {transform_indices = @transform_2, window_bounds = array<i64: 1, 16, 128>}]} {
    %c0 = arith.constant 0 : index
    %c0_0 = arith.constant 0 : index
    %0 = vector.load %arg2[%c0, %c0_0] : memref<16x33xf32, #tpu.memory_space<vmem>>, vector<16x33xf32>
    %c0_1 = arith.constant 0 : index
    %c0_2 = arith.constant 0 : index
    %c0_3 = arith.constant 0 : index
    %1 = vector.load %arg3[%c0_1, %c0_2, %c0_3] : memref<1x33x128xf32, #tpu.memory_space<vmem>>, vector<1x33x128xf32>
    %2 = vector.shape_cast %1 : vector<1x33x128xf32> to vector<33x128xf32>
    %cst = arith.constant dense<0.000000e+00> : vector<16x128xf32>
    %3 = tpu.matmul %0, %2, %cst {dimension_numbers = #tpu.dot_dimension_numbers<[1], [0], [0], [1], [0, 0, 1, 1], [], []>, precision = #tpu.contract_precision<fp32>} : vector<16x33xf32>, vector<33x128xf32>, vector<16x128xf32> -> vector<16x128xf32>
    %cst_4 = arith.constant 5.96046448E-8 : f32
    %4 = vector.broadcast %cst_4 : f32 to vector<16x128xf32>
    %5 = arith.addf %3, %4 : vector<16x128xf32>
    %6 = math.log %5 : vector<16x128xf32>
    %c0_5 = arith.constant 0 : index
    %c0_6 = arith.constant 0 : index
    %c0_7 = arith.constant 0 : index
    %7 = vector.load %arg4[%c0_5, %c0_6, %c0_7] : memref<1x16x128xf32, #tpu.memory_space<vmem>>, vector<1x16x128xf32>
    %8 = vector.shape_cast %7 : vector<1x16x128xf32> to vector<16x128xf32>
    %9 = vector.shape_cast %6 : vector<16x128xf32> to vector<1x16x128xf32>
    tpu.vector_store %arg4[%c0_5, %c0_6, %c0_7], %9 {strides = array<i32>} : memref<1x16x128xf32, #tpu.memory_space<vmem>>, vector<1x16x128xf32>,
    return
  }
  func.func @transform_0(%arg0: i32, %arg1: i32) -> (i32, i32) {
    %c0_i32 = arith.constant 0 : i32
    %c0_i32_0 = arith.constant 0 : i32
    %c0_i32_1 = arith.constant 0 : i32
    return %c0_i32, %c0_i32_0 : i32, i32
  }
  func.func @transform_1(%arg0: i32, %arg1: i32) -> (i32, i32, i32) {
    %c0_i32 = arith.constant 0 : i32
    %c0_i32_0 = arith.constant 0 : i32
    return %arg0, %c0_i32, %arg1 : i32, i32, i32
  }
  func.func @transform_2(%arg0: i32, %arg1: i32) -> (i32, i32, i32) {
    %c0_i32 = arith.constant 0 : i32
    %c0_i32_0 = arith.constant 0 : i32
    return %arg0, %c0_i32, %arg1 : i32, i32, i32
  }
}

</mosaic_0001>

<llo_original>
// kernel: tpu_custom_call.1
$region0: #{tpu_custom_call.1}
  #allocation0 [shape = 'u32[]', space=smem, size = 0x4, offset = 0x4, fixed_abs, tag = 'smem constant byte address 0x4 - core index']
  #allocation1 [shape = 'u32[144,128]{1,0:T(1,128)}', space=vmem, size = 0x12000, scoped, tag = 'internal scratch']
  %s0 = inlined_call_operand.vmem [shape: f32[16,33], index: 0, kind: input, shape index: {}]
  %s1 = inlined_call_operand.vmem [shape: f32[2,33,16], index: 1, kind: input, shape index: {}]
  %s2 = inlined_call_operand.hbm [shape: f32[2,16,16], index: 2, kind: output, shape index: {}]
  %s3 = sld [smem:[#allocation0]]
  $region41: #{tpu_custom_call.1} parent=0
    _
  %s5 = ssub.s32 1, %s3
  %s6 = scalar_select 0, %s5, %s3
  $region1: #{tpu_custom_call.1} parent=0
    #allocation2 [shape = 'u8[16384]{0}', space=vmem, size = 0x4000, scoped, tag = 'output window, operand 0']
    #allocation3 [shape = 's32[2]{0}', space=sflag, size = 0x8, scoped, tag = 'scoped memory for tpu_custom_call.1']
    %7 = vsyncpa [#allocation3], 0
    %s8 = scalar_lea.sflag [#allocation3], 1
    %9 = vsyncpa %s8, 0
    loop: start=0, step=1, limit=4
    $region2: #{tpu_custom_call.1} parent=1 // loop_pre_header
      _
    $region3: #{tpu_custom_call.1} parent=1 // loop_header
      %s11 = sphi 0, %s15
      %p12 = scmp.ge.s32.totalorder %s11, 4
      %s18 = sphi 0, %s30
      %s19 = sphi 0, %s26
      %s20 = sphi 0, %s18
      %s21 = sphi 0, %s19
      %s22 = sphi 0, %s20
      %s23 = sphi 0, %s21
      %s31 = sphi 0, %s31
      %s33 = sphi 0, %s31
      %s34 = sphi 0, %s33
      %s48 = sphi 0, %s34
      %s56 = sphi 0, %s58
      %s59 = sphi 0, %s56
      %s60 = sphi 0, %s59
      %s76 = sphi 0, %s60
      %s84 = sphi 0, %s86
      %s87 = sphi 0, %s84
      %s88 = sphi 0, %s87
      %s104 = sphi 0, %s88
    $region4: #{tpu_custom_call.1} parent=1 // loop_header_branch
      %14 = sbr.rel (%p12) target = $region8
    $region5: #{tpu_custom_call.1} parent=1 // loop_body
      %s16 = ssub.s32 %s11, 1
      %s17 = ssub.s32 %s11, 2
      %s24 = sadd.s32 1, %s19
      %p25 = scmp.ge.s32.totalorder %s24, 1
      %s26 = scalar_select %p25, 0, %s24
      %s27 = sadd.s32 1, %s18
      %s28 = scalar_select %p25, %s27, %s18
      %p29 = scmp.ge.s32.totalorder %s28, 2
      %s30 = scalar_select %p29, 0, %s28
      %s32 = sadd.s32 %s31, 1
      %p35 = scmp.eq.s32.totalorder %s11, 1
      %p36 = scmp.ne.s32.totalorder %s31, %s33
      %p37 = scmp.eq.s32.totalorder %s11, 0
      %p38 = por %p36, %p37
      %p39 = scmp.ne.s32.totalorder %s31, %s33
      %p40 = scmp.eq.s32.totalorder %s16, 1
      %p41 = por %p39, %p40
      %p42 = scmp.ne.s32.totalorder %s33, %s34
      %p43 = scmp.eq.s32.totalorder %s16, 0
      %p44 = por %p42, %p43
      %p45 = scmp.ne.s32.totalorder %s33, %s34
      %p46 = scmp.eq.s32.totalorder %s17, 1
      %p47 = por %p45, %p46
      %p49 = scmp.ne.s32.totalorder %s34, %s48
      %p50 = scmp.eq.s32.totalorder %s17, 0
      %p51 = por %p49, %p50
      %s52 = ssub.s32 %s18, %s30
      %s53 = ssub.s32 %s19, %s26
      %s54 = sor.u32 %s52, %s53
      %p55 = scmp.eq.s32.totalorder %s54, 0
      %s57 = sadd.s32 %s56, 1
      %s58 = scalar_select %p55, %s56, %s57
      %p61 = pneg %p55
      %p62 = scmp.eq.s32.totalorder %s11, 1
      %p63 = por %p61, %p62
      %p64 = scmp.ne.s32.totalorder %s56, %s59
      %p65 = scmp.eq.s32.totalorder %s11, 0
      %p66 = por %p64, %p65
      %p67 = scmp.ne.s32.totalorder %s56, %s59
      %p68 = scmp.eq.s32.totalorder %s16, 1
      %p69 = por %p67, %p68
      %p70 = scmp.ne.s32.totalorder %s59, %s60
      %p71 = scmp.eq.s32.totalorder %s16, 0
      %p72 = por %p70, %p71
      %p73 = scmp.ne.s32.totalorder %s59, %s60
      %p74 = scmp.eq.s32.totalorder %s17, 1
      %p75 = por %p73, %p74
      %p77 = scmp.ne.s32.totalorder %s60, %s76
      %p78 = scmp.eq.s32.totalorder %s17, 0
      %p79 = por %p77, %p78
      %s80 = ssub.s32 %s18, %s30
      %s81 = ssub.s32 %s19, %s26
      %s82 = sor.u32 %s80, %s81
      %p83 = scmp.eq.s32.totalorder %s82, 0
      %s85 = sadd.s32 %s84, 1
      %s86 = scalar_select %p83, %s84, %s85
      %p89 = pneg %p83
      %p90 = scmp.eq.s32.totalorder %s11, 1
      %p91 = por %p89, %p90
      %p92 = scmp.ne.s32.totalorder %s84, %s87
      %p93 = scmp.eq.s32.totalorder %s11, 0
      %p94 = por %p92, %p93
      %p95 = scmp.ne.s32.totalorder %s84, %s87
      %p96 = scmp.eq.s32.totalorder %s16, 1
      %p97 = por %p95, %p96
      %p98 = scmp.ne.s32.totalorder %s87, %s88
      %p99 = scmp.eq.s32.totalorder %s16, 0
      %p100 = por %p98, %p99
      %p101 = scmp.ne.s32.totalorder %s87, %s88
      %p102 = scmp.eq.s32.totalorder %s17, 1
      %p103 = por %p101, %p102
      %p105 = scmp.ne.s32.totalorder %s88, %s104
      %p106 = scmp.eq.s32.totalorder %s17, 0
      %p107 = por %p105, %p106
      %p108 = scmp.le.s32.totalorder 1, %s11
      %p109 = scmp.lt.s32.totalorder %s11, 3
      %p110 = pnand %p108, %p109
      %p111 = pneg %p110
      // Predicated region
      $region9: #{tpu_custom_call.1} parent=5 // pred_check
        _
      $region10: #{tpu_custom_call.1} parent=5 // pred_check_branch
        %113 = sbr.rel (%p110) target = $region12
      $region11: #{tpu_custom_call.1} parent=5 // pred_region
        %s114 = ssub.s32 %s11, 1
        // Predicated region
        $region13: #{tpu_custom_call.1} parent=11 // pred_check
          %p115 = pneg %p44
        $region14: #{tpu_custom_call.1} parent=11 // pred_check_branch
          %117 = sbr.rel (%p115) target = $region16
        $region15: #{tpu_custom_call.1} parent=11 // pred_region
          _
        $region16: #{tpu_custom_call.1} parent=11 // pred_fallthru
          _
      $region12: #{tpu_custom_call.1} parent=5 // pred_fallthru
        _
      %p118 = scmp.lt.s32.totalorder %s11, 2
      // Predicated region
      $region17: #{tpu_custom_call.1} parent=5 // pred_check
        %p119 = pneg %p118
      $region18: #{tpu_custom_call.1} parent=5 // pred_check_branch
        %121 = sbr.rel (%p119) target = $region20
      $region19: #{tpu_custom_call.1} parent=5 // pred_region
        // Predicated region
        $region21: #{tpu_custom_call.1} parent=19 // pred_check
          %p122 = pneg %p66
        $region22: #{tpu_custom_call.1} parent=19 // pred_check_branch
          %124 = sbr.rel (%p122) target = $region24
        $region23: #{tpu_custom_call.1} parent=19 // pred_region
          %p125 = scmp.lt.s32.totalorder %s18, 1
          %s126 = scalar_select %p125, %s18, 1
          %p127 = scmp.lt.s32.totalorder %s19, 0
          %s128 = scalar_select %p127, %s19, 0
          %s129 = smul.addr %s126, 5
          %s130 = sadd.s32 %s128, %s129
          %s131 = smul.addr %s130, 8
          %s132 = scalar_lea.vmem %s1, %s131
        $region24: #{tpu_custom_call.1} parent=19 // pred_fallthru
          _
      $region20: #{tpu_custom_call.1} parent=5 // pred_fallthru
        _
      %p133 = scmp.le.s32.totalorder 1, %s11
      %p134 = scmp.lt.s32.totalorder %s11, 3
      %p135 = pnand %p133, %p134
      %p136 = pneg %p135
      // Predicated region
      $region25: #{tpu_custom_call.1} parent=5 // pred_check
        _
      $region26: #{tpu_custom_call.1} parent=5 // pred_check_branch
        %138 = sbr.rel (%p135) target = $region28
      $region27: #{tpu_custom_call.1} parent=5 // pred_region
        %s139 = ssub.s32 %s11, 1
        %p140 = pneg %p44
        %p141 = pneg %p41
        %p142 = scmp.lt.s32.totalorder %s20, 1
        %s143 = scalar_select %p142, %s20, 1
        %p144 = scmp.lt.s32.totalorder %s21, 0
        %s145 = scalar_select %p144, %s21, 0
        %s146 = smul.addr %s143, 5
        %s147 = sadd.s32 %s145, %s146
        %s148 = smul.addr %s147, 8
        %s149 = scalar_lea.vmem %s1, %s148
        %p150 = pneg %p72
        %p151 = pneg %p69
        %p152 = pneg %p100
        %p153 = pneg %p97
        %s154 = sand.u32 %s87, 1
        %s155 = scalar_lea.sflag [#allocation3], %s154
        %s156 = sand.u32 %s87, 1
        %s157 = smul.addr %s156, 16
        %s158 = scalar_lea.vmem [#allocation2], %s157
        %p159 = scmp.lt.s32.totalorder %s20, 1
        %s160 = scalar_select %p159, %s20, 1
        %p161 = scmp.lt.s32.totalorder %s21, 0
        %s162 = scalar_select %p161, %s21, 0
        %s163 = smul.addr %s160, 5
        %s164 = sadd.s32 %s162, %s163
        %s165 = smul.addr %s164, 8
        %s166 = scalar_lea.vmem %s1, %s165
        %v167 = vld [vmem:[%s0] sm:$0xff]
        %v168 = vld [vmem:[%s0 + $0x8] sm:$0xff]
        %v169 = vld [vmem:[%s166] sm:$0xff]
        %v170 = vld [vmem:[%s166 + $0x8] sm:$0xff]
        %v171 = vld [vmem:[%s166 + $0x10] sm:$0xff]
        %v172 = vld [vmem:[%s166 + $0x18] sm:$0xff]
        %v173 = vld [vmem:[%s166 + $0x20] sm:$0x1]
        %vm174 = vcmask 269312
        %v176 = vsel %vm174, %v167, 0
        %v179 = vsel %vm174, %v168, 0
        %vm181 = vcmask 1040384
        %v183 = vsel %vm181, %v173, 0
        %185 = vmatprep.subr.mxu0 0.0
        %v186 = vand.u32 %v169, 4294901760
        %187 = vmatpush1.msra.mxu0 %v186
        %188 = vmatprep.subr.mxu0 0.0
        %v189 = vand.u32 %v170, 4294901760
        %190 = vmatpush1.msra.mxu0 %v189
        %191 = vmatprep.subr.mxu0 0.0
        %v192 = vand.u32 %v171, 4294901760
        %193 = vmatpush1.msra.mxu0 %v192
        %194 = vmatprep.subr.mxu0 0.0
        %v195 = vand.u32 %v172, 4294901760
        %196 = vmatpush1.msra.mxu0 %v195
        %197 = vmatprep.subr.mxu0 0.0
        %v198 = vand.u32 %v183, 4294901760
        %199 = vmatpush1.msra.mxu0 %v198
        %200 = vmatprep.subr.mxu0 0.0
        %201 = vmatpush1.msra.mxu0 0.0
        %202 = vmatprep.subr.mxu0 0.0
        %203 = vmatpush1.msra.mxu0 0.0
        %204 = vmatprep.subr.mxu0 0.0
        %205 = vmatpush1.msra.mxu0 0.0
        %206 = vmatprep.subr.mxu0 0.0
        %207 = vmatpush1.msra.mxu0 0.0
        %208 = vmatprep.subr.mxu0 0.0
        %209 = vmatpush1.msra.mxu0 0.0
        %210 = vmatprep.subr.mxu0 0.0
        %211 = vmatpush1.msra.mxu0 0.0
        %212 = vmatprep.subr.mxu0 0.0
        %213 = vmatpush1.msra.mxu0 0.0
        %214 = vmatprep.subr.mxu0 0.0
        %215 = vmatpush1.msra.mxu0 0.0
        %216 = vmatprep.subr.mxu0 0.0
        %217 = vmatpush1.msra.mxu0 0.0
        %218 = vmatprep.subr.mxu0 0.0
        %219 = vmatpush1.msra.mxu0 0.0
        %220 = vmatprep.subr.mxu0 0.0
        %221 = vmatpush1.msra.mxu0 0.0
        %222 = vmatprep.subr.mxu0 0.0
        %223 = vmatpush1.msra.mxu0 0.0
        %224 = vmatprep.subr.mxu0 0.0
        %225 = vmatpush1.msra.mxu0 0.0
        %226 = vmatprep.subr.mxu0 0.0
        %227 = vmatpush1.msra.mxu0 0.0
        %228 = vmatprep.subr.mxu0 0.0
        %229 = vmatpush1.msra.mxu0 0.0
        %230 = vmatprep.subr.mxu0 0.0
        %231 = vmatpush1.msra.mxu0 0.0
        %232 = vmatprep.subr.mxu0 0.0
        %233 = vmatpush1.msra.mxu0 0.0
        %234 = vmatprep.subr.mxu0 0.0
        %235 = vmatpush1.msra.mxu0 0.0
        %236 = vmatprep.subr.mxu0 0.0
        %237 = vmatpush1.msra.mxu0 0.0
        %238 = vmatprep.subr.mxu0 0.0
        %239 = vmatpush1.msra.mxu0 0.0
        %240 = vmatprep.subr.mxu0 0.0
        %241 = vmatpush1.msra.mxu0 0.0
        %242 = vmatprep.subr.mxu0 0.0
        %243 = vmatpush1.msra.mxu0 0.0
        %244 = vmatprep.subr.mxu0 0.0
        %245 = vmatpush1.msra.mxu0 0.0
        %246 = vmatprep.subr.mxu0 0.0
        %247 = vmatpush1.msra.mxu0 0.0
        %248 = vmatprep.subr.mxu0 0.0
        %249 = vmatpush1.msra.mxu0 0.0
        %250 = vmatprep.subr.mxu0 0.0
        %251 = vmatpush1.msra.mxu0 0.0
        %252 = vmatprep.subr.mxu0 0.0
        %253 = vmatpush1.msra.mxu0 0.0
        %254 = vmatprep.mubr.f32.mxu0 0.0
        %v255 = vand.u32 %v176, 4294901760
        %v256 = vsub.f32 %v176, %v255
        %v257 = vand.u32 %v256, 4294901760
        %v258 = vsub.f32 %v256, %v257
        %v259 = vand.u32 %v258, 4294901760
        %260 = vmatmul.mubr.f32.gmra.mrb[0].mxu0 %v259
        %v261 = vpop.f32.mrb[0].mxu0
        %v262 = vadd.f32 5.9604645e-08, %v261
        %v263 = vpop.f32.mrb[0].mxu0
        %264 = vmatprep.mubr.f32.mxu0 0.0
        %v265 = vand.u32 %v179, 4294901760
        %v266 = vsub.f32 %v179, %v265
        %v267 = vand.u32 %v266, 4294901760
        %v268 = vsub.f32 %v266, %v267
        %v269 = vand.u32 %v268, 4294901760
        %270 = vmatmul.mubr.f32.gmra.mrb[0].mxu0 %v269
        %v271 = vpop.f32.mrb[0].mxu0
        %v272 = vadd.f32 5.9604645e-08, %v271
        %v273 = vpop.f32.mrb[0].mxu0
        %274 = vdwg.mxu0
        %275 = vmatprep.subr.mxu0 0.0
        %v276 = vand.u32 %v169, 4294901760
        %v277 = vsub.f32 %v169, %v276
        %v278 = vand.u32 %v277, 4294901760
        %v279 = vsub.f32 %v277, %v278
        %v280 = vand.u32 %v279, 4294901760
        %281 = vmatpush1.msra.mxu0 %v280
        %282 = vmatprep.subr.mxu0 0.0
        %v283 = vand.u32 %v170, 4294901760
        %v284 = vsub.f32 %v170, %v283
        %v285 = vand.u32 %v284, 4294901760
        %v286 = vsub.f32 %v284, %v285
        %v287 = vand.u32 %v286, 4294901760
        %288 = vmatpush1.msra.mxu0 %v287
        %289 = vmatprep.subr.mxu0 0.0
        %v290 = vand.u32 %v171, 4294901760
        %v291 = vsub.f32 %v171, %v290
        %v292 = vand.u32 %v291, 4294901760
        %v293 = vsub.f32 %v291, %v292
        %v294 = vand.u32 %v293, 4294901760
        %295 = vmatpush1.msra.mxu0 %v294
        %296 = vmatprep.subr.mxu0 0.0
        %v297 = vand.u32 %v172, 4294901760
        %v298 = vsub.f32 %v172, %v297
        %v299 = vand.u32 %v298, 4294901760
        %v300 = vsub.f32 %v298, %v299
        %v301 = vand.u32 %v300, 4294901760
        %302 = vmatpush1.msra.mxu0 %v301
        %303 = vmatprep.subr.mxu0 0.0
        %v304 = vand.u32 %v183, 4294901760
        %v305 = vsub.f32 %v183, %v304
        %v306 = vand.u32 %v305, 4294901760
        %v307 = vsub.f32 %v305, %v306
        %v308 = vand.u32 %v307, 4294901760
        %309 = vmatpush1.msra.mxu0 %v308
        %310 = vmatprep.subr.mxu0 0.0
        %311 = vmatpush1.msra.mxu0 0.0
        %312 = vmatprep.subr.mxu0 0.0
        %313 = vmatpush1.msra.mxu0 0.0
        %314 = vmatprep.subr.mxu0 0.0
        %315 = vmatpush1.msra.mxu0 0.0
        %316 = vmatprep.subr.mxu0 0.0
        %317 = vmatpush1.msra.mxu0 0.0
        %318 = vmatprep.subr.mxu0 0.0
        %319 = vmatpush1.msra.mxu0 0.0
        %320 = vmatprep.subr.mxu0 0.0
        %321 = vmatpush1.msra.mxu0 0.0
        %322 = vmatprep.subr.mxu0 0.0
        %323 = vmatpush1.msra.mxu0 0.0
        %324 = vmatprep.subr.mxu0 0.0
        %325 = vmatpush1.msra.mxu0 0.0
        %326 = vmatprep.subr.mxu0 0.0
        %327 = vmatpush1.msra.mxu0 0.0
        %328 = vmatprep.subr.mxu0 0.0
        %329 = vmatpush1.msra.mxu0 0.0
        %330 = vmatprep.subr.mxu0 0.0
        %331 = vmatpush1.msra.mxu0 0.0
        %332 = vmatprep.subr.mxu0 0.0
        %333 = vmatpush1.msra.mxu0 0.0
        %334 = vmatprep.subr.mxu0 0.0
        %335 = vmatpush1.msra.mxu0 0.0
        %336 = vmatprep.subr.mxu0 0.0
        %337 = vmatpush1.msra.mxu0 0.0
        %338 = vmatprep.subr.mxu0 0.0
        %339 = vmatpush1.msra.mxu0 0.0
        %340 = vmatprep.subr.mxu0 0.0
        %341 = vmatpush1.msra.mxu0 0.0
        %342 = vmatprep.subr.mxu0 0.0
        %343 = vmatpush1.msra.mxu0 0.0
        %344 = vmatprep.subr.mxu0 0.0
        %345 = vmatpush1.msra.mxu0 0.0
        %346 = vmatprep.subr.mxu0 0.0
        %347 = vmatpush1.msra.mxu0 0.0
        %348 = vmatprep.subr.mxu0 0.0
        %349 = vmatpush1.msra.mxu0 0.0
        %350 = vmatprep.subr.mxu0 0.0
        %351 = vmatpush1.msra.mxu0 0.0
        %352 = vmatprep.subr.mxu0 0.0
        %353 = vmatpush1.msra.mxu0 0.0
        %354 = vmatprep.subr.mxu0 0.0
        %355 = vmatpush1.msra.mxu0 0.0
        %356 = vmatprep.subr.mxu0 0.0
        %357 = vmatpush1.msra.mxu0 0.0
        %358 = vmatprep.subr.mxu0 0.0
        %359 = vmatpush1.msra.mxu0 0.0
        %360 = vmatprep.subr.mxu0 0.0
        %361 = vmatpush1.msra.mxu0 0.0
        %362 = vmatprep.subr.mxu0 0.0
        %363 = vmatpush1.msra.mxu0 0.0
        %364 = vmatprep.mubr.f32.mxu0 0.0
        %v365 = vand.u32 %v176, 4294901760
        %366 = vmatmul.mubr.f32.gmra.mrb[0].mxu0 %v365
        %v367 = vpop.f32.mrb[0].mxu0
        %v368 = vadd.f32 %v262, %v367
        %v369 = vpop.f32.mrb[0].mxu0
        %370 = vmatprep.mubr.f32.mxu0 0.0
        %v371 = vand.u32 %v179, 4294901760
        %372 = vmatmul.mubr.f32.gmra.mrb[0].mxu0 %v371
        %v373 = vpop.f32.mrb[0].mxu0
        %v374 = vadd.f32 %v272, %v373
        %v375 = vpop.f32.mrb[0].mxu0
        %376 = vdwg.mxu0
        %377 = vmatprep.subr.mxu0 0.0
        %v378 = vand.u32 %v169, 4294901760
        %v379 = vsub.f32 %v169, %v378
        %380 = vmatpush1.msra.mxu0 %v379
        %381 = vmatprep.subr.mxu0 0.0
        %v382 = vand.u32 %v170, 4294901760
        %v383 = vsub.f32 %v170, %v382
        %384 = vmatpush1.msra.mxu0 %v383
        %385 = vmatprep.subr.mxu0 0.0
        %v386 = vand.u32 %v171, 4294901760
        %v387 = vsub.f32 %v171, %v386
        %388 = vmatpush1.msra.mxu0 %v387
        %389 = vmatprep.subr.mxu0 0.0
        %v390 = vand.u32 %v172, 4294901760
        %v391 = vsub.f32 %v172, %v390
        %392 = vmatpush1.msra.mxu0 %v391
        %393 = vmatprep.subr.mxu0 0.0
        %v394 = vand.u32 %v183, 4294901760
        %v395 = vsub.f32 %v183, %v394
        %396 = vmatpush1.msra.mxu0 %v395
        %397 = vmatprep.subr.mxu0 0.0
        %398 = vmatpush1.msra.mxu0 0.0
        %399 = vmatprep.subr.mxu0 0.0
        %400 = vmatpush1.msra.mxu0 0.0
        %401 = vmatprep.subr.mxu0 0.0
        %402 = vmatpush1.msra.mxu0 0.0
        %403 = vmatprep.subr.mxu0 0.0
        %404 = vmatpush1.msra.mxu0 0.0
        %405 = vmatprep.subr.mxu0 0.0
        %406 = vmatpush1.msra.mxu0 0.0
        %407 = vmatprep.subr.mxu0 0.0
        %408 = vmatpush1.msra.mxu0 0.0
        %409 = vmatprep.subr.mxu0 0.0
        %410 = vmatpush1.msra.mxu0 0.0
        %411 = vmatprep.subr.mxu0 0.0
        %412 = vmatpush1.msra.mxu0 0.0
        %413 = vmatprep.subr.mxu0 0.0
        %414 = vmatpush1.msra.mxu0 0.0
        %415 = vmatprep.subr.mxu0 0.0
        %416 = vmatpush1.msra.mxu0 0.0
        %417 = vmatprep.subr.mxu0 0.0
        %418 = vmatpush1.msra.mxu0 0.0
        %419 = vmatprep.subr.mxu0 0.0
        %420 = vmatpush1.msra.mxu0 0.0
        %421 = vmatprep.subr.mxu0 0.0
        %422 = vmatpush1.msra.mxu0 0.0
        %423 = vmatprep.subr.mxu0 0.0
        %424 = vmatpush1.msra.mxu0 0.0
        %425 = vmatprep.subr.mxu0 0.0
        %426 = vmatpush1.msra.mxu0 0.0
        %427 = vmatprep.subr.mxu0 0.0
        %428 = vmatpush1.msra.mxu0 0.0
        %429 = vmatprep.subr.mxu0 0.0
        %430 = vmatpush1.msra.mxu0 0.0
        %431 = vmatprep.subr.mxu0 0.0
        %432 = vmatpush1.msra.mxu0 0.0
        %433 = vmatprep.subr.mxu0 0.0
        %434 = vmatpush1.msra.mxu0 0.0
        %435 = vmatprep.subr.mxu0 0.0
        %436 = vmatpush1.msra.mxu0 0.0
        %437 = vmatprep.subr.mxu0 0.0
        %438 = vmatpush1.msra.mxu0 0.0
        %439 = vmatprep.subr.mxu0 0.0
        %440 = vmatpush1.msra.mxu0 0.0
        %441 = vmatprep.subr.mxu0 0.0
        %442 = vmatpush1.msra.mxu0 0.0
        %443 = vmatprep.subr.mxu0 0.0
        %444 = vmatpush1.msra.mxu0 0.0
        %445 = vmatprep.subr.mxu0 0.0
        %446 = vmatpush1.msra.mxu0 0.0
        %447 = vmatprep.subr.mxu0 0.0
        %448 = vmatpush1.msra.mxu0 0.0
        %449 = vmatprep.subr.mxu0 0.0
        %450 = vmatpush1.msra.mxu0 0.0
        %451 = vmatprep.mubr.f32.mxu0 0.0
        %v452 = vand.u32 %v176, 4294901760
        %v453 = vsub.f32 %v176, %v452
        %454 = vmatmul.mubr.f32.gmra.mrb[0].mxu0 %v453
        %v455 = vpop.f32.mrb[0].mxu0
        %v456 = vadd.f32 %v368, %v455
        %v457 = vpop.f32.mrb[0].mxu0
        %458 = vmatprep.mubr.f32.mxu0 0.0
        %v459 = vand.u32 %v179, 4294901760
        %v460 = vsub.f32 %v179, %v459
        %461 = vmatmul.mubr.f32.gmra.mrb[0].mxu0 %v460
        %v462 = vpop.f32.mrb[0].mxu0
        %v463 = vadd.f32 %v374, %v462
        %v464 = vpop.f32.mrb[0].mxu0
        %465 = vdwg.mxu0
        %466 = vmatprep.subr.mxu0 0.0
        %v467 = vand.u32 %v169, 4294901760
        %468 = vmatpush1.msra.mxu0 %v467
        %469 = vmatprep.subr.mxu0 0.0
        %v470 = vand.u32 %v170, 4294901760
        %471 = vmatpush1.msra.mxu0 %v470
        %472 = vmatprep.subr.mxu0 0.0
        %v473 = vand.u32 %v171, 4294901760
        %474 = vmatpush1.msra.mxu0 %v473
        %475 = vmatprep.subr.mxu0 0.0
        %v476 = vand.u32 %v172, 4294901760
        %477 = vmatpush1.msra.mxu0 %v476
        %478 = vmatprep.subr.mxu0 0.0
        %v479 = vand.u32 %v183, 4294901760
        %480 = vmatpush1.msra.mxu0 %v479
        %481 = vmatprep.subr.mxu0 0.0
        %482 = vmatpush1.msra.mxu0 0.0
        %483 = vmatprep.subr.mxu0 0.0
        %484 = vmatpush1.msra.mxu0 0.0
        %485 = vmatprep.subr.mxu0 0.0
        %486 = vmatpush1.msra.mxu0 0.0
        %487 = vmatprep.subr.mxu0 0.0
        %488 = vmatpush1.msra.mxu0 0.0
        %489 = vmatprep.subr.mxu0 0.0
        %490 = vmatpush1.msra.mxu0 0.0
        %491 = vmatprep.subr.mxu0 0.0
        %492 = vmatpush1.msra.mxu0 0.0
        %493 = vmatprep.subr.mxu0 0.0
        %494 = vmatpush1.msra.mxu0 0.0
        %495 = vmatprep.subr.mxu0 0.0
        %496 = vmatpush1.msra.mxu0 0.0
        %497 = vmatprep.subr.mxu0 0.0
        %498 = vmatpush1.msra.mxu0 0.0
        %499 = vmatprep.subr.mxu0 0.0
        %500 = vmatpush1.msra.mxu0 0.0
        %501 = vmatprep.subr.mxu0 0.0
        %502 = vmatpush1.msra.mxu0 0.0
        %503 = vmatprep.subr.mxu0 0.0
        %504 = vmatpush1.msra.mxu0 0.0
        %505 = vmatprep.subr.mxu0 0.0
        %506 = vmatpush1.msra.mxu0 0.0
        %507 = vmatprep.subr.mxu0 0.0
        %508 = vmatpush1.msra.mxu0 0.0
        %509 = vmatprep.subr.mxu0 0.0
        %510 = vmatpush1.msra.mxu0 0.0
        %511 = vmatprep.subr.mxu0 0.0
        %512 = vmatpush1.msra.mxu0 0.0
        %513 = vmatprep.subr.mxu0 0.0
        %514 = vmatpush1.msra.mxu0 0.0
        %515 = vmatprep.subr.mxu0 0.0
        %516 = vmatpush1.msra.mxu0 0.0
        %517 = vmatprep.subr.mxu0 0.0
        %518 = vmatpush1.msra.mxu0 0.0
        %519 = vmatprep.subr.mxu0 0.0
        %520 = vmatpush1.msra.mxu0 0.0
        %521 = vmatprep.subr.mxu0 0.0
        %522 = vmatpush1.msra.mxu0 0.0
        %523 = vmatprep.subr.mxu0 0.0
        %524 = vmatpush1.msra.mxu0 0.0
        %525 = vmatprep.subr.mxu0 0.0
        %526 = vmatpush1.msra.mxu0 0.0
        %527 = vmatprep.subr.mxu0 0.0
        %528 = vmatpush1.msra.mxu0 0.0
        %529 = vmatprep.subr.mxu0 0.0
        %530 = vmatpush1.msra.mxu0 0.0
        %531 = vmatprep.subr.mxu0 0.0
        %532 = vmatpush1.msra.mxu0 0.0
        %533 = vmatprep.subr.mxu0 0.0
        %534 = vmatpush1.msra.mxu0 0.0
        %535 = vmatprep.mubr.f32.mxu0 0.0
        %v536 = vand.u32 %v176, 4294901760
        %v537 = vsub.f32 %v176, %v536
        %v538 = vand.u32 %v537, 4294901760
        %539 = vmatmul.mubr.f32.gmra.mrb[0].mxu0 %v538
        %v540 = vpop.f32.mrb[0].mxu0
        %v541 = vadd.f32 %v456, %v540
        %v542 = vpop.f32.mrb[0].mxu0
        %543 = vmatprep.mubr.f32.mxu0 0.0
        %v544 = vand.u32 %v179, 4294901760
        %v545 = vsub.f32 %v179, %v544
        %v546 = vand.u32 %v545, 4294901760
        %547 = vmatmul.mubr.f32.gmra.mrb[0].mxu0 %v546
        %v548 = vpop.f32.mrb[0].mxu0
        %v549 = vadd.f32 %v463, %v548
        %v550 = vpop.f32.mrb[0].mxu0
        %551 = vdwg.mxu0
        %552 = vmatprep.subr.mxu0 0.0
        %v553 = vand.u32 %v169, 4294901760
        %v554 = vsub.f32 %v169, %v553
        %v555 = vand.u32 %v554, 4294901760
        %556 = vmatpush1.msra.mxu0 %v555
        %557 = vmatprep.subr.mxu0 0.0
        %v558 = vand.u32 %v170, 4294901760
        %v559 = vsub.f32 %v170, %v558
        %v560 = vand.u32 %v559, 4294901760
        %561 = vmatpush1.msra.mxu0 %v560
        %562 = vmatprep.subr.mxu0 0.0
        %v563 = vand.u32 %v171, 4294901760
        %v564 = vsub.f32 %v171, %v563
        %v565 = vand.u32 %v564, 4294901760
        %566 = vmatpush1.msra.mxu0 %v565
        %567 = vmatprep.subr.mxu0 0.0
        %v568 = vand.u32 %v172, 4294901760
        %v569 = vsub.f32 %v172, %v568
        %v570 = vand.u32 %v569, 4294901760
        %571 = vmatpush1.msra.mxu0 %v570
        %572 = vmatprep.subr.mxu0 0.0
        %v573 = vand.u32 %v183, 4294901760
        %v574 = vsub.f32 %v183, %v573
        %v575 = vand.u32 %v574, 4294901760
        %576 = vmatpush1.msra.mxu0 %v575
        %577 = vmatprep.subr.mxu0 0.0
        %578 = vmatpush1.msra.mxu0 0.0
        %579 = vmatprep.subr.mxu0 0.0
        %580 = vmatpush1.msra.mxu0 0.0
        %581 = vmatprep.subr.mxu0 0.0
        %582 = vmatpush1.msra.mxu0 0.0
        %583 = vmatprep.subr.mxu0 0.0
        %584 = vmatpush1.msra.mxu0 0.0
        %585 = vmatprep.subr.mxu0 0.0
        %586 = vmatpush1.msra.mxu0 0.0
        %587 = vmatprep.subr.mxu0 0.0
        %588 = vmatpush1.msra.mxu0 0.0
        %589 = vmatprep.subr.mxu0 0.0
        %590 = vmatpush1.msra.mxu0 0.0
        %591 = vmatprep.subr.mxu0 0.0
        %592 = vmatpush1.msra.mxu0 0.0
        %593 = vmatprep.subr.mxu0 0.0
        %594 = vmatpush1.msra.mxu0 0.0
        %595 = vmatprep.subr.mxu0 0.0
        %596 = vmatpush1.msra.mxu0 0.0
        %597 = vmatprep.subr.mxu0 0.0
        %598 = vmatpush1.msra.mxu0 0.0
        %599 = vmatprep.subr.mxu0 0.0
        %600 = vmatpush1.msra.mxu0 0.0
        %601 = vmatprep.subr.mxu0 0.0
        %602 = vmatpush1.msra.mxu0 0.0
        %603 = vmatprep.subr.mxu0 0.0
        %604 = vmatpush1.msra.mxu0 0.0
        %605 = vmatprep.subr.mxu0 0.0
        %606 = vmatpush1.msra.mxu0 0.0
        %607 = vmatprep.subr.mxu0 0.0
        %608 = vmatpush1.msra.mxu0 0.0
        %609 = vmatprep.subr.mxu0 0.0
        %610 = vmatpush1.msra.mxu0 0.0
        %611 = vmatprep.subr.mxu0 0.0
        %612 = vmatpush1.msra.mxu0 0.0
        %613 = vmatprep.subr.mxu0 0.0
        %614 = vmatpush1.msra.mxu0 0.0
        %615 = vmatprep.subr.mxu0 0.0
        %616 = vmatpush1.msra.mxu0 0.0
        %617 = vmatprep.subr.mxu0 0.0
        %618 = vmatpush1.msra.mxu0 0.0
        %619 = vmatprep.subr.mxu0 0.0
        %620 = vmatpush1.msra.mxu0 0.0
        %621 = vmatprep.subr.mxu0 0.0
        %622 = vmatpush1.msra.mxu0 0.0
        %623 = vmatprep.subr.mxu0 0.0
        %624 = vmatpush1.msra.mxu0 0.0
        %625 = vmatprep.subr.mxu0 0.0
        %626 = vmatpush1.msra.mxu0 0.0
        %627 = vmatprep.subr.mxu0 0.0
        %628 = vmatpush1.msra.mxu0 0.0
        %629 = vmatprep.subr.mxu0 0.0
        %630 = vmatpush1.msra.mxu0 0.0
        %631 = vmatprep.mubr.f32.mxu0 0.0
        %v632 = vand.u32 %v176, 4294901760
        %633 = vmatmul.mubr.f32.gmra.mrb[0].mxu0 %v632
        %v634 = vpop.f32.mrb[0].mxu0
        %v635 = vadd.f32 %v541, %v634
        %v636 = vpop.f32.mrb[0].mxu0
        %637 = vmatprep.mubr.f32.mxu0 0.0
        %v638 = vand.u32 %v179, 4294901760
        %639 = vmatmul.mubr.f32.gmra.mrb[0].mxu0 %v638
        %v640 = vpop.f32.mrb[0].mxu0
        %v641 = vadd.f32 %v549, %v640
        %v642 = vpop.f32.mrb[0].mxu0
        %643 = vdwg.mxu0
        %644 = vmatprep.subr.mxu0 0.0
        %v645 = vand.u32 %v169, 4294901760
        %646 = vmatpush1.msra.mxu0 %v645
        %647 = vmatprep.subr.mxu0 0.0
        %v648 = vand.u32 %v170, 4294901760
        %649 = vmatpush1.msra.mxu0 %v648
        %650 = vmatprep.subr.mxu0 0.0
        %v651 = vand.u32 %v171, 4294901760
        %652 = vmatpush1.msra.mxu0 %v651
        %653 = vmatprep.subr.mxu0 0.0
        %v654 = vand.u32 %v172, 4294901760
        %655 = vmatpush1.msra.mxu0 %v654
        %656 = vmatprep.subr.mxu0 0.0
        %v657 = vand.u32 %v183, 4294901760
        %658 = vmatpush1.msra.mxu0 %v657
        %659 = vmatprep.subr.mxu0 0.0
        %660 = vmatpush1.msra.mxu0 0.0
        %661 = vmatprep.subr.mxu0 0.0
        %662 = vmatpush1.msra.mxu0 0.0
        %663 = vmatprep.subr.mxu0 0.0
        %664 = vmatpush1.msra.mxu0 0.0
        %665 = vmatprep.subr.mxu0 0.0
        %666 = vmatpush1.msra.mxu0 0.0
        %667 = vmatprep.subr.mxu0 0.0
        %668 = vmatpush1.msra.mxu0 0.0
        %669 = vmatprep.subr.mxu0 0.0
        %670 = vmatpush1.msra.mxu0 0.0
        %671 = vmatprep.subr.mxu0 0.0
        %672 = vmatpush1.msra.mxu0 0.0
        %673 = vmatprep.subr.mxu0 0.0
        %674 = vmatpush1.msra.mxu0 0.0
        %675 = vmatprep.subr.mxu0 0.0
        %676 = vmatpush1.msra.mxu0 0.0
        %677 = vmatprep.subr.mxu0 0.0
        %678 = vmatpush1.msra.mxu0 0.0
        %679 = vmatprep.subr.mxu0 0.0
        %680 = vmatpush1.msra.mxu0 0.0
        %681 = vmatprep.subr.mxu0 0.0
        %682 = vmatpush1.msra.mxu0 0.0
        %683 = vmatprep.subr.mxu0 0.0
        %684 = vmatpush1.msra.mxu0 0.0
        %685 = vmatprep.subr.mxu0 0.0
        %686 = vmatpush1.msra.mxu0 0.0
        %687 = vmatprep.subr.mxu0 0.0
        %688 = vmatpush1.msra.mxu0 0.0
        %689 = vmatprep.subr.mxu0 0.0
        %690 = vmatpush1.msra.mxu0 0.0
        %691 = vmatprep.subr.mxu0 0.0
        %692 = vmatpush1.msra.mxu0 0.0
        %693 = vmatprep.subr.mxu0 0.0
        %694 = vmatpush1.msra.mxu0 0.0
        %695 = vmatprep.subr.mxu0 0.0
        %696 = vmatpush1.msra.mxu0 0.0
        %697 = vmatprep.subr.mxu0 0.0
        %698 = vmatpush1.msra.mxu0 0.0
        %699 = vmatprep.subr.mxu0 0.0
        %700 = vmatpush1.msra.mxu0 0.0
        %701 = vmatprep.subr.mxu0 0.0
        %702 = vmatpush1.msra.mxu0 0.0
        %703 = vmatprep.subr.mxu0 0.0
        %704 = vmatpush1.msra.mxu0 0.0
        %705 = vmatprep.subr.mxu0 0.0
        %706 = vmatpush1.msra.mxu0 0.0
        %707 = vmatprep.subr.mxu0 0.0
        %708 = vmatpush1.msra.mxu0 0.0
        %709 = vmatprep.subr.mxu0 0.0
        %710 = vmatpush1.msra.mxu0 0.0
        %711 = vmatprep.subr.mxu0 0.0
        %712 = vmatpush1.msra.mxu0 0.0
        %713 = vmatprep.mubr.f32.mxu0 0.0
        %v714 = vand.u32 %v176, 4294901760
        %715 = vmatmul.mubr.f32.gmra.mrb[0].mxu0 %v714
        %v716 = vpop.f32.mrb[0].mxu0
        %v717 = vadd.f32 %v635, %v716
        %v718 = vpop.f32.mrb[0].mxu0
        %719 = vmatprep.mubr.f32.mxu0 0.0
        %v720 = vand.u32 %v179, 4294901760
        %721 = vmatmul.mubr.f32.gmra.mrb[0].mxu0 %v720
        %v722 = vpop.f32.mrb[0].mxu0
        %v723 = vadd.f32 %v641, %v722
        %v724 = vpop.f32.mrb[0].mxu0
        %725 = vdwg.mxu0
        %v726 = vlog2.pop %v717
        %v727 = vmul.f32 %v726, 0.6931472
        %v728 = vlog2.pop %v723
        %v729 = vmul.f32 %v728, 0.6931472
        %730 = vst [vmem:[%s158] sm:$0xff] %v727
        %731 = vst [vmem:[%s158 + $0x8] sm:$0xff] %v729
        %s732 = sand.u32 %s87, 1
        %s733 = scalar_lea.sflag [#allocation3], %s732
        %s734 = sand.u32 %s87, 1
        %s735 = smul.addr %s734, 16
        %s736 = scalar_lea.vmem [#allocation2], %s735
        // Predicated region
        $region29: #{tpu_custom_call.1} parent=27 // pred_check
          %p737 = pneg %p97
        $region30: #{tpu_custom_call.1} parent=27 // pred_check_branch
          %739 = sbr.rel (%p737) target = $region32
        $region31: #{tpu_custom_call.1} parent=27 // pred_region
          %s741 = ssub.s32 256, 256
          %742 = vsyncadd %s733, %s741
          %s743 = smul.addr %s20, 2
          %s744 = sadd.s32 %s21, %s743
          %s745 = smul.addr %s744, 128
          %s746 = scalar_lea.hbm %s2, %s745
          %s747 = sshll.u32 %s736, 4
          %s748 = int_to_ptr.vmem [resolvable:$true] %s747
          %753 = dma.vmem_to_hbm [thread:$0]  %s748, 256, %s746, %s733, 128, 128, 8
        $region32: #{tpu_custom_call.1} parent=27 // pred_fallthru
          _
      $region28: #{tpu_custom_call.1} parent=5 // pred_fallthru
        _
      %p754 = scmp.le.s32.totalorder 2, %s11
      // Predicated region
      $region33: #{tpu_custom_call.1} parent=5 // pred_check
        %p755 = pneg %p754
      $region34: #{tpu_custom_call.1} parent=5 // pred_check_branch
        %757 = sbr.rel (%p755) target = $region36
      $region35: #{tpu_custom_call.1} parent=5 // pred_region
        %s758 = ssub.s32 %s11, 2
        // Predicated region
        $region37: #{tpu_custom_call.1} parent=35 // pred_check
          %p759 = pneg %p103
        $region38: #{tpu_custom_call.1} parent=35 // pred_check_branch
          %761 = sbr.rel (%p759) target = $region40
        $region39: #{tpu_custom_call.1} parent=35 // pred_region
          %s762 = sand.u32 %s88, 1
          %s763 = scalar_lea.sflag [#allocation3], %s762
          %s764 = sand.u32 %s88, 1
          %s765 = smul.addr %s764, 16
          %s766 = scalar_lea.vmem [#allocation2], %s765
          %767 = dma.done %s763, 256
        $region40: #{tpu_custom_call.1} parent=35 // pred_fallthru
          _
      $region36: #{tpu_custom_call.1} parent=5 // pred_fallthru
        _
    $region6: #{tpu_custom_call.1} parent=1 // loop_footer
      %s15 = sadd.s32 1, %s11
    $region7: #{tpu_custom_call.1} parent=1 // loop_footer_branch
      %10 = sbr.rel target = $region3
    $region8: #{tpu_custom_call.1} parent=1 // loop_exit
      _
    %768 = vsyncpa [#allocation3], 1
    %s769 = scalar_lea.sflag [#allocation3], 1
    %770 = vsyncpa %s769, 1

</llo_original>
